<compile_context>
chip_gen: v6e
topology: v6e:2x2x1
jax: 0.10.0
libtpu: 0.0.40
codegen_flags: <defaults>
</compile_context>

<pallas_src>
import functools

import jax
import jax.numpy as jnp
from jax.experimental import pallas as pl
from jax.experimental.pallas import tpu as pltpu

IN_FEATURES = 4
HIDDEN = 64
OUT_FEATURES = 3
OUT_PAD = 8            # lane-padded output width (== full last dim of out array)
TILE_B_DEFAULT = 8192  # large tiles amortize the ~0.35us per-grid-step overhead


def _mlp_kernel(x_ref, w1_ref, b1_ref, w2_ref, b2_ref, w3_ref, b3_ref, o_ref):
    # fc1 + ReLU  (MXU dot with f32 accumulation; bias-add/ReLU in f32 on VPU)
    h1 = jnp.dot(x_ref[...], w1_ref[...],
                 preferred_element_type=jnp.float32) + b1_ref[...]
    h1 = jnp.maximum(h1, 0.0)
    # fc2 + ReLU  (cast activations to the weight dtype: with bf16 weights the
    # MXU matmul is single-pass bf16; no-op when weights are f32)
    h2 = jnp.dot(h1.astype(w2_ref.dtype), w2_ref[...],
                 preferred_element_type=jnp.float32) + b2_ref[...]
    h2 = jnp.maximum(h2, 0.0)
    # fc3 (no activation) — w3/b3 are zero-padded to OUT_PAD columns, so the
    # first OUT_FEATURES columns match the un-padded layer exactly.
    out = jnp.dot(h2.astype(w3_ref.dtype), w3_ref[...],
                  preferred_element_type=jnp.float32) + b3_ref[...]
    o_ref[...] = out.astype(o_ref.dtype)


@functools.partial(jax.jit, static_argnames=("tile_b", "use_bf16"))
def ann_forward(x, params, *, tile_b=TILE_B_DEFAULT, use_bf16=False):
    """x: (B, 4) float32. params: dict of w1,b1,w2,b2,w3,b3 (W stored (in,out))."""
    w1, b1 = params["w1"], params["b1"]
    w2, b2 = params["w2"], params["b2"]
    w3, b3 = params["w3"], params["b3"]

    B = x.shape[0]
    out_dtype = jnp.float32

    # Zero-pad the 3-wide final layer to OUT_PAD columns. Padded columns are
    # exactly zero and sliced off, so the useful columns are unchanged.
    w3p = jnp.zeros((HIDDEN, OUT_PAD), w3.dtype).at[:, :OUT_FEATURES].set(w3)
    b3p = jnp.zeros((1, OUT_PAD), b3.dtype).at[:, :OUT_FEATURES].set(b3)

    if use_bf16:
        # bf16 inputs/weights: single-pass MXU matmuls on v6e/v7x and half the
        # x DMA bytes; accumulation, bias-add and ReLU stay in f32.
        x_in = x.astype(jnp.bfloat16)
        w1c = w1.astype(jnp.bfloat16)
        w2c = w2.astype(jnp.bfloat16)
        w3c = w3p.astype(jnp.bfloat16)
    else:
        x_in = x
        w1c, w2c, w3c = w1, w2, w3p

    # Round the batch up to a multiple of 8 (sublane alignment) only — at most
    # 7 padded rows, negligible HBM traffic (no padding to a multiple of tb).
    b8 = pl.cdiv(B, 8) * 8
    if b8 != B:
        x_in = jnp.pad(x_in, ((0, b8 - B), (0, 0)))

    # Batch tile: multiple of 8, no larger than the (aligned) batch. If the
    # whole batch would fit in a single tile but is splittable, use two tiles
    # so the "parallel" batch axis can shard across both TensorCores on v7x
    # (costs ~0.35us on single-TC v5e/v6e — negligible).
    tb = max(8, (min(tile_b, b8) // 8) * 8)
    if tb >= b8 and b8 >= 16:
        tb = ((b8 // 2 + 7) // 8) * 8
    grid = (pl.cdiv(b8, tb),)

    def resident(shape):
        # Weights/biases: full block + constant index map -> DMA'd once and
        # kept VMEM-resident across all grid steps.
        return pl.BlockSpec(shape, lambda i: (0,) * len(shape))

    in_bytes = x_in.dtype.itemsize
    w_bytes = w1c.dtype.itemsize
    flops = 2 * b8 * (IN_FEATURES * HIDDEN + HIDDEN * HIDDEN + HIDDEN * OUT_PAD)
    bytes_accessed = (
        b8 * IN_FEATURES * in_bytes          # x read
        + b8 * OUT_PAD * 4                   # out write
        + (w1c.size + w2c.size + w3c.size) * w_bytes
        + (b1.size + b2.size + b3p.size) * 4
    )

    out_padded = pl.pallas_call(
        _mlp_kernel,
        out_shape=jax.ShapeDtypeStruct((b8, OUT_PAD), out_dtype),
        grid=grid,
        in_specs=[
            pl.BlockSpec((tb, IN_FEATURES), lambda i: (i, 0)),  # x: batch-tiled
            resident(w1c.shape), resident(b1.shape),
            resident(w2c.shape), resident(b2.shape),
            resident(w3c.shape), resident(b3p.shape),
        ],
        out_specs=pl.BlockSpec((tb, OUT_PAD), lambda i: (i, 0)),
        compiler_params=pltpu.CompilerParams(
            dimension_semantics=("parallel",),   # megacore sharding on v7x
            vmem_limit_bytes=32 * 1024 * 1024,   # safe inside v7x's 64 MiB/TC
        ),
        cost_estimate=pl.CostEstimate(
            flops=flops, transcendentals=0, bytes_accessed=bytes_accessed
        ),
    )(x_in, w1c, b1, w2c, b2, w3c, b3p)

    return out_padded[:B, :OUT_FEATURES]


def init_params(key):
    """Deterministic init mimicking PyTorch Linear default U[-1/sqrt(fan_in), +]."""
    dims = [(IN_FEATURES, HIDDEN), (HIDDEN, HIDDEN), (HIDDEN, OUT_FEATURES)]
    params = {}
    keys = jax.random.split(key, 2 * len(dims))
    for i, (fan_in, fan_out) in enumerate(dims):
        bound = 1.0 / jnp.sqrt(fan_in)
        w = jax.random.uniform(keys[2 * i], (fan_in, fan_out), jnp.float32,
                               minval=-bound, maxval=bound)
        b = jax.random.uniform(keys[2 * i + 1], (1, fan_out), jnp.float32,
                               minval=-bound, maxval=bound)
        params[f"w{i+1}"] = w
        params[f"b{i+1}"] = b
    return params


def ann_reference(x, params):
    """Pure-JAX reference (true-f32 matmuls) for correctness checks."""
    hp = jax.lax.Precision.HIGHEST
    h = jnp.maximum(jnp.dot(x, params["w1"], precision=hp) + params["b1"], 0.0)
    h = jnp.maximum(jnp.dot(h, params["w2"], precision=hp) + params["b2"], 0.0)
    return jnp.dot(h, params["w3"], precision=hp) + params["b3"]


if __name__ == "__main__":
    key = jax.random.PRNGKey(0)
    pkey, xkey = jax.random.split(key)
    params = init_params(pkey)

    # Small batch consistent with nn.Linear(4, 64): (batch=8, features=4).
    x = jax.random.normal(xkey, (8, 4), jnp.float32)
    ref = ann_reference(x, params)

    # f32 path (default): matches the reference module numerics.
    out = jax.block_until_ready(ann_forward(x, params))
    assert out.shape == (8, OUT_FEATURES), out.shape
    assert jnp.allclose(out, ref, atol=1e-4, rtol=1e-4), "f32 mismatch vs reference"

    # bf16-input path (perf option for v6e/v7x): looser tolerance.
    out_bf16 = jax.block_until_ready(ann_forward(x, params, use_bf16=True))
    assert out_bf16.shape == (8, OUT_FEATURES), out_bf16.shape
    assert jnp.allclose(out_bf16, ref, atol=5e-2, rtol=5e-2), "bf16 mismatch"

    # Ragged batch (not a multiple of 8 or of the tile): exercises the minimal
    # 8-row alignment pad, the partial last block, and the >=2-step grid.
    x2 = jax.random.normal(jax.random.PRNGKey(1), (37, 4), jnp.float32)
    out2 = jax.block_until_ready(ann_forward(x2, params, tile_b=16))
    ref2 = ann_reference(x2, params)
    assert out2.shape == (37, OUT_FEATURES), out2.shape
    assert jnp.allclose(out2, ref2, atol=1e-4, rtol=1e-4), "ragged batch mismatch"

    print("KERNEL_OK")
</pallas_src>

<mosaic_0001>
module attributes {stable_mosaic.version = 11 : i64} {
  func.func @_mlp_kernel(%arg0: i32, %arg1: memref<8x4xf32, #tpu.memory_space<vmem>>, %arg2: memref<4x64xf32, #tpu.memory_space<vmem>>, %arg3: memref<1x64xf32, #tpu.memory_space<vmem>>, %arg4: memref<64x64xf32, #tpu.memory_space<vmem>>, %arg5: memref<1x64xf32, #tpu.memory_space<vmem>>, %arg6: memref<64x8xf32, #tpu.memory_space<vmem>>, %arg7: memref<1x8xf32, #tpu.memory_space<vmem>>, %arg8: memref<8x8xf32, #tpu.memory_space<vmem>>) attributes {dimension_semantics = [#tpu.dimension_semantics<parallel>], iteration_bounds = array<i64: 1>, scalar_prefetch = 0 : i64, scratch_operands = 0 : i64, tpu.core_type = #tpu.core_type<tc>, window_params = [{transform_indices = @transform_0, window_bounds = array<i64: 8, 4>}, {pipeline_mode = #tpu.pipeline_mode<synchronous>, transform_indices = @transform_1, window_bounds = array<i64: 4, 64>}, {pipeline_mode = #tpu.pipeline_mode<synchronous>, transform_indices = @transform_2, window_bounds = array<i64: 1, 64>}, {pipeline_mode = #tpu.pipeline_mode<synchronous>, transform_indices = @transform_3, window_bounds = array<i64: 64, 64>}, {pipeline_mode = #tpu.pipeline_mode<synchronous>, transform_indices = @transform_4, window_bounds = array<i64: 1, 64>}, {pipeline_mode = #tpu.pipeline_mode<synchronous>, transform_indices = @transform_5, window_bounds = array<i64: 64, 8>}, {pipeline_mode = #tpu.pipeline_mode<synchronous>, transform_indices = @transform_6, window_bounds = array<i64: 1, 8>}, {transform_indices = @transform_7, window_bounds = array<i64: 8, 8>}]} {
    %c0 = arith.constant 0 : index
    %c0_0 = arith.constant 0 : index
    %0 = vector.load %arg1[%c0, %c0_0] : memref<8x4xf32, #tpu.memory_space<vmem>>, vector<8x4xf32>
    %c0_1 = arith.constant 0 : index
    %c0_2 = arith.constant 0 : index
    %1 = vector.load %arg2[%c0_1, %c0_2] : memref<4x64xf32, #tpu.memory_space<vmem>>, vector<4x64xf32>
    %cst = arith.constant dense<0.000000e+00> : vector<8x64xf32>
    %2 = tpu.matmul %0, %1, %cst {dimension_numbers = #tpu.dot_dimension_numbers<[1], [0], [0], [1], [0, 0, 1, 1], [], []>} : vector<8x4xf32>, vector<4x64xf32>, vector<8x64xf32> -> vector<8x64xf32>
    %c0_3 = arith.constant 0 : index
    %c0_4 = arith.constant 0 : index
    %3 = vector.load %arg3[%c0_3, %c0_4] : memref<1x64xf32, #tpu.memory_space<vmem>>, vector<1x64xf32>
    %4 = vector.broadcast %3 : vector<1x64xf32> to vector<8x64xf32>
    %5 = arith.addf %2, %4 : vector<8x64xf32>
    %cst_5 = arith.constant 0.000000e+00 : f32
    %6 = vector.broadcast %cst_5 : f32 to vector<8x64xf32>
    %7 = arith.maximumf %5, %6 : vector<8x64xf32>
    %c0_6 = arith.constant 0 : index
    %c0_7 = arith.constant 0 : index
    %8 = vector.load %arg4[%c0_6, %c0_7] : memref<64x64xf32, #tpu.memory_space<vmem>>, vector<64x64xf32>
    %cst_8 = arith.constant dense<0.000000e+00> : vector<8x64xf32>
    %9 = tpu.matmul %7, %8, %cst_8 {dimension_numbers = #tpu.dot_dimension_numbers<[1], [0], [0], [1], [0, 0, 1, 1], [], []>} : vector<8x64xf32>, vector<64x64xf32>, vector<8x64xf32> -> vector<8x64xf32>
    %c0_9 = arith.constant 0 : index
    %c0_10 = arith.constant 0 : index
    %10 = vector.load %arg5[%c0_9, %c0_10] : memref<1x64xf32, #tpu.memory_space<vmem>>, vector<1x64xf32>
    %11 = vector.broadcast %10 : vector<1x64xf32> to vector<8x64xf32>
    %12 = arith.addf %9, %11 : vector<8x64xf32>
    %cst_11 = arith.constant 0.000000e+00 : f32
    %13 = vector.broadcast %cst_11 : f32 to vector<8x64xf32>
    %14 = arith.maximumf %12, %13 : vector<8x64xf32>
    %c0_12 = arith.constant 0 : index
    %c0_13 = arith.constant 0 : index
    %15 = vector.load %arg6[%c0_12, %c0_13] : memref<64x8xf32, #tpu.memory_space<vmem>>, vector<64x8xf32>
    %cst_14 = arith.constant dense<0.000000e+00> : vector<8x8xf32>
    %16 = tpu.matmul %14, %15, %cst_14 {dimension_numbers = #tpu.dot_dimension_numbers<[1], [0], [0], [1], [0, 0, 1, 1], [], []>} : vector<8x64xf32>, vector<64x8xf32>, vector<8x8xf32> -> vector<8x8xf32>
    %c0_15 = arith.constant 0 : index
    %c0_16 = arith.constant 0 : index
    %17 = vector.load %arg7[%c0_15, %c0_16] : memref<1x8xf32, #tpu.memory_space<vmem>>, vector<1x8xf32>
    %18 = vector.broadcast %17 : vector<1x8xf32> to vector<8x8xf32>
    %19 = arith.addf %16, %18 : vector<8x8xf32>
    %c0_17 = arith.constant 0 : index
    %c0_18 = arith.constant 0 : index
    %20 = vector.load %arg8[%c0_17, %c0_18] : memref<8x8xf32, #tpu.memory_space<vmem>>, vector<8x8xf32>
    tpu.vector_store %arg8[%c0_17, %c0_18], %19 {strides = array<i32>} : memref<8x8xf32, #tpu.memory_space<vmem>>, vector<8x8xf32>,
    return
  }
  func.func @transform_0(%arg0: i32) -> (i32, i32) {
    %c0_i32 = arith.constant 0 : i32
    %c0_i32_0 = arith.constant 0 : i32
    return %arg0, %c0_i32 : i32, i32
  }
  func.func @transform_1(%arg0: i32) -> (i32, i32) {
    %c0_i32 = arith.constant 0 : i32
    %c0_i32_0 = arith.constant 0 : i32
    %c0_i32_1 = arith.constant 0 : i32
    return %c0_i32, %c0_i32_0 : i32, i32
  }
  func.func @transform_2(%arg0: i32) -> (i32, i32) {
    %c0_i32 = arith.constant 0 : i32
    %c0_i32_0 = arith.constant 0 : i32
    %c0_i32_1 = arith.constant 0 : i32
    return %c0_i32, %c0_i32_0 : i32, i32
  }
  func.func @transform_3(%arg0: i32) -> (i32, i32) {
    %c0_i32 = arith.constant 0 : i32
    %c0_i32_0 = arith.constant 0 : i32
    %c0_i32_1 = arith.constant 0 : i32
    return %c0_i32, %c0_i32_0 : i32, i32
  }
  func.func @transform_4(%arg0: i32) -> (i32, i32) {
    %c0_i32 = arith.constant 0 : i32
    %c0_i32_0 = arith.constant 0 : i32
    %c0_i32_1 = arith.constant 0 : i32
    return %c0_i32, %c0_i32_0 : i32, i32
  }
  func.func @transform_5(%arg0: i32) -> (i32, i32) {
    %c0_i32 = arith.constant 0 : i32
    %c0_i32_0 = arith.constant 0 : i32
    %c0_i32_1 = arith.constant 0 : i32
    return %c0_i32, %c0_i32_0 : i32, i32
  }
  func.func @transform_6(%arg0: i32) -> (i32, i32) {
    %c0_i32 = arith.constant 0 : i32
    %c0_i32_0 = arith.constant 0 : i32
    %c0_i32_1 = arith.constant 0 : i32
    return %c0_i32, %c0_i32_0 : i32, i32
  }
  func.func @transform_7(%arg0: i32) -> (i32, i32) {
    %c0_i32 = arith.constant 0 : i32
    %c0_i32_0 = arith.constant 0 : i32
    return %arg0, %c0_i32 : i32, i32
  }
}

</mosaic_0001>

<llo_original>
// kernel: ann_forward.1
$region0: #{ann_forward.1}
  #allocation0 [shape = 'u32[]', space=smem, size = 0x4, offset = 0x4, fixed_abs, tag = 'smem constant byte address 0x4 - core index']
  #allocation1 [shape = 'u32[144,128]{1,0:T(1,128)}', space=vmem, size = 0x12000, scoped, tag = 'internal scratch']
  %s0 = inlined_call_operand.vmem [shape: f32[8,4], index: 0, kind: input, shape index: {}]
  %s1 = inlined_call_operand.vmem [shape: f32[4,64], index: 1, kind: input, shape index: {}]
  %s2 = inlined_call_operand.vmem [shape: f32[1,64], index: 2, kind: input, shape index: {}]
  %s3 = inlined_call_operand.vmem [shape: f32[64,64], index: 3, kind: input, shape index: {}]
  %s4 = inlined_call_operand.vmem [shape: f32[1,64], index: 4, kind: input, shape index: {}]
  %s5 = inlined_call_operand.vmem [shape: f32[64,8], index: 5, kind: input, shape index: {}]
  %s6 = inlined_call_operand.vmem [shape: f32[1,8], index: 6, kind: input, shape index: {}]
  %s7 = inlined_call_operand.vmem [shape: f32[8,8], index: 7, kind: output, shape index: {}]
  %s8 = sld [smem:[#allocation0]]
  $region38: #{ann_forward.1} parent=0
    _
  %s10 = ssub.s32 1, %s8
  %s11 = scalar_select 0, %s10, %s8
  // Predicated region
  $region2: #{ann_forward.1} parent=0 // pred_check
    _
  $region3: #{ann_forward.1} parent=0 // pred_check_branch
    %13 = sbr.rel (0) target = $region5
  $region4: #{ann_forward.1} parent=0 // pred_region
    _
  $region5: #{ann_forward.1} parent=0 // pred_fallthru
    _
  // Predicated region
  $region6: #{ann_forward.1} parent=0 // pred_check
    _
  $region7: #{ann_forward.1} parent=0 // pred_check_branch
    %15 = sbr.rel (0) target = $region9
  $region8: #{ann_forward.1} parent=0 // pred_region
    _
  $region9: #{ann_forward.1} parent=0 // pred_fallthru
    _
  // Predicated region
  $region10: #{ann_forward.1} parent=0 // pred_check
    _
  $region11: #{ann_forward.1} parent=0 // pred_check_branch
    %17 = sbr.rel (0) target = $region13
  $region12: #{ann_forward.1} parent=0 // pred_region
    _
  $region13: #{ann_forward.1} parent=0 // pred_fallthru
    _
  // Predicated region
  $region14: #{ann_forward.1} parent=0 // pred_check
    _
  $region15: #{ann_forward.1} parent=0 // pred_check_branch
    %19 = sbr.rel (0) target = $region17
  $region16: #{ann_forward.1} parent=0 // pred_region
    _
  $region17: #{ann_forward.1} parent=0 // pred_fallthru
    _
  // Predicated region
  $region18: #{ann_forward.1} parent=0 // pred_check
    _
  $region19: #{ann_forward.1} parent=0 // pred_check_branch
    %21 = sbr.rel (0) target = $region21
  $region20: #{ann_forward.1} parent=0 // pred_region
    _
  $region21: #{ann_forward.1} parent=0 // pred_fallthru
    _
  // Predicated region
  $region22: #{ann_forward.1} parent=0 // pred_check
    _
  $region23: #{ann_forward.1} parent=0 // pred_check_branch
    %23 = sbr.rel (0) target = $region25
  $region24: #{ann_forward.1} parent=0 // pred_region
    _
  $region25: #{ann_forward.1} parent=0 // pred_fallthru
    _
  // Predicated region
  $region26: #{ann_forward.1} parent=0 // pred_check
    _
  $region27: #{ann_forward.1} parent=0 // pred_check_branch
    %25 = sbr.rel (0) target = $region29
  $region28: #{ann_forward.1} parent=0 // pred_region
    _
  $region29: #{ann_forward.1} parent=0 // pred_fallthru
    _
  %v26 = vld [vmem:[%s0] sm:$0xff]
  %v27 = vld [vmem:[%s1] sm:$0xf]
  %v28 = vld [vmem:[%s2] sm:$0x1]
  %v30 = vlaneseq
  %v31 = vshrl.u32 %v30, 7
  %v32 = vsub.s32 0, %v31
  %v33 = vrot.slane %v28, %v32
  %vm35 = vcmask 31744
  %v37 = vsel %vm35, %v26, 0
  %vm39 = vcmask 1043456
  %v41 = vsel %vm39, %v27, 0
  %43 = vmatprep.subr.mxu0 0.0
  %44 = vmatpush1.msra.mxu0 0.0
  %45 = vmatprep.subr.mxu0 0.0
  %46 = vmatpush1.msra.mxu0 0.0
  %47 = vmatprep.subr.mxu0 0.0
  %48 = vmatpush1.msra.mxu0 0.0
  %49 = vmatprep.subr.mxu0 0.0
  %50 = vmatpush1.msra.mxu0 0.0
  %51 = vmatprep.subr.mxu0 0.0
  %52 = vmatpush1.msra.mxu0 0.0
  %53 = vmatprep.subr.mxu0 0.0
  %54 = vmatpush1.msra.mxu0 0.0
  %55 = vmatprep.subr.mxu0 0.0
  %56 = vmatpush1.msra.mxu0 0.0
  %57 = vmatprep.subr.mxu0 0.0
  %58 = vmatpush1.msra.mxu0 0.0
  %59 = vmatprep.subr.mxu0 0.0
  %60 = vmatpush1.msra.mxu0 0.0
  %61 = vmatprep.subr.mxu0 0.0
  %62 = vmatpush1.msra.mxu0 0.0
  %63 = vmatprep.subr.mxu0 0.0
  %64 = vmatpush1.msra.mxu0 0.0
  %65 = vmatprep.subr.mxu0 0.0
  %66 = vmatpush1.msra.mxu0 0.0
  %67 = vmatprep.subr.mxu0 0.0
  %68 = vmatpush1.msra.mxu0 0.0
  %69 = vmatprep.subr.mxu0 0.0
  %70 = vmatpush1.msra.mxu0 0.0
  %71 = vmatprep.subr.mxu0 0.0
  %72 = vmatpush1.msra.mxu0 0.0
  %73 = vmatprep.subr.mxu0 0.0
  %74 = vmatpush1.msra.mxu0 %v41
  %75 = vmatprep.subr.mxu0 0.0
  %76 = vmatpush2.msra.mxu0 0.0
  %77 = vmatprep.subr.mxu0 0.0
  %78 = vmatpush2.msra.mxu0 0.0
  %79 = vmatprep.subr.mxu0 0.0
  %80 = vmatpush2.msra.mxu0 0.0
  %81 = vmatprep.subr.mxu0 0.0
  %82 = vmatpush2.msra.mxu0 0.0
  %83 = vmatprep.subr.mxu0 0.0
  %84 = vmatpush2.msra.mxu0 0.0
  %85 = vmatprep.subr.mxu0 0.0
  %86 = vmatpush2.msra.mxu0 0.0
  %87 = vmatprep.subr.mxu0 0.0
  %88 = vmatpush2.msra.mxu0 0.0
  %89 = vmatprep.subr.mxu0 0.0
  %90 = vmatpush2.msra.mxu0 0.0
  %91 = vmatprep.subr.mxu0 0.0
  %92 = vmatpush2.msra.mxu0 0.0
  %93 = vmatprep.subr.mxu0 0.0
  %94 = vmatpush2.msra.mxu0 0.0
  %95 = vmatprep.subr.mxu0 0.0
  %96 = vmatpush2.msra.mxu0 0.0
  %97 = vmatprep.subr.mxu0 0.0
  %98 = vmatpush2.msra.mxu0 0.0
  %99 = vmatprep.subr.mxu0 0.0
  %100 = vmatpush2.msra.mxu0 0.0
  %101 = vmatprep.subr.mxu0 0.0
  %102 = vmatpush2.msra.mxu0 0.0
  %103 = vmatprep.subr.mxu0 0.0
  %104 = vmatpush2.msra.mxu0 0.0
  %105 = vmatprep.subr.mxu0 0.0
  %106 = vmatpush2.msra.mxu0 0.0
  %107 = vmatprep.mubr.f32.mxu0 0.0
  %108 = vmatmul.mubr.f32.gmra.mxu0 %v37
  %v109 = vpop.f32.mrf.mxu0
  %v110 = vadd.f32 %v33, %v109
  %v111 = vpop.f32.mrf.mxu0
  %112 = vdwg.mxu0
  %v113 = vmax.f32 %v110, 0.0
  %v114 = vld [vmem:[%s3] sm:$0xff]
  %v115 = vld [vmem:[%s3 + $0x8] sm:$0xff]
  %v116 = vld [vmem:[%s3 + $0x10] sm:$0xff]
  %v117 = vld [vmem:[%s3 + $0x18] sm:$0xff]
  %v118 = vld [vmem:[%s3 + $0x20] sm:$0xff]
  %v119 = vld [vmem:[%s3 + $0x28] sm:$0xff]
  %v120 = vld [vmem:[%s3 + $0x30] sm:$0xff]
  %v121 = vld [vmem:[%s3 + $0x38] sm:$0xff]
  %v122 = vld [vmem:[%s4] sm:$0x1]
  %v124 = vlaneseq
  %v125 = vshrl.u32 %v124, 7
  %v126 = vsub.s32 0, %v125
  %v127 = vrot.slane %v122, %v126
  %vm129 = vcmask 523264
  %v131 = vsel %vm129, %v113, 0
  %133 = vmatprep.subr.mxu0 0.0
  %134 = vmatpush1.msra.mxu0 0.0
  %135 = vmatprep.subr.mxu0 0.0
  %136 = vmatpush1.msra.mxu0 0.0
  %137 = vmatprep.subr.mxu0 0.0
  %138 = vmatpush1.msra.mxu0 0.0
  %139 = vmatprep.subr.mxu0 0.0
  %140 = vmatpush1.msra.mxu0 0.0
  %141 = vmatprep.subr.mxu0 0.0
  %142 = vmatpush1.msra.mxu0 0.0
  %143 = vmatprep.subr.mxu0 0.0
  %144 = vmatpush1.msra.mxu0 0.0
  %145 = vmatprep.subr.mxu0 0.0
  %146 = vmatpush1.msra.mxu0 0.0
  %147 = vmatprep.subr.mxu0 0.0
  %148 = vmatpush1.msra.mxu0 0.0
  %149 = vmatprep.subr.mxu0 0.0
  %150 = vmatpush1.msra.mxu0 %v121
  %151 = vmatprep.subr.mxu0 0.0
  %152 = vmatpush1.msra.mxu0 %v120
  %153 = vmatprep.subr.mxu0 0.0
  %154 = vmatpush1.msra.mxu0 %v119
  %155 = vmatprep.subr.mxu0 0.0
  %156 = vmatpush1.msra.mxu0 %v118
  %157 = vmatprep.subr.mxu0 0.0
  %158 = vmatpush1.msra.mxu0 %v117
  %159 = vmatprep.subr.mxu0 0.0
  %160 = vmatpush1.msra.mxu0 %v116
  %161 = vmatprep.subr.mxu0 0.0
  %162 = vmatpush1.msra.mxu0 %v115
  %163 = vmatprep.subr.mxu0 0.0
  %164 = vmatpush1.msra.mxu0 %v114
  %165 = vmatprep.subr.mxu0 0.0
  %166 = vmatpush2.msra.mxu0 0.0
  %167 = vmatprep.subr.mxu0 0.0
  %168 = vmatpush2.msra.mxu0 0.0
  %169 = vmatprep.subr.mxu0 0.0
  %170 = vmatpush2.msra.mxu0 0.0
  %171 = vmatprep.subr.mxu0 0.0
  %172 = vmatpush2.msra.mxu0 0.0
  %173 = vmatprep.subr.mxu0 0.0
  %174 = vmatpush2.msra.mxu0 0.0
  %175 = vmatprep.subr.mxu0 0.0
  %176 = vmatpush2.msra.mxu0 0.0
  %177 = vmatprep.subr.mxu0 0.0
  %178 = vmatpush2.msra.mxu0 0.0
  %179 = vmatprep.subr.mxu0 0.0
  %180 = vmatpush2.msra.mxu0 0.0
  %181 = vmatprep.subr.mxu0 0.0
  %182 = vmatpush2.msra.mxu0 0.0
  %183 = vmatprep.subr.mxu0 0.0
  %184 = vmatpush2.msra.mxu0 0.0
  %185 = vmatprep.subr.mxu0 0.0
  %186 = vmatpush2.msra.mxu0 0.0
  %187 = vmatprep.subr.mxu0 0.0
  %188 = vmatpush2.msra.mxu0 0.0
  %189 = vmatprep.subr.mxu0 0.0
  %190 = vmatpush2.msra.mxu0 0.0
  %191 = vmatprep.subr.mxu0 0.0
  %192 = vmatpush2.msra.mxu0 0.0
  %193 = vmatprep.subr.mxu0 0.0
  %194 = vmatpush2.msra.mxu0 0.0
  %195 = vmatprep.subr.mxu0 0.0
  %196 = vmatpush2.msra.mxu0 0.0
  %197 = vmatprep.mubr.f32.mxu0 0.0
  %198 = vmatmul.mubr.f32.gmra.mxu0 %v131
  %v199 = vpop.f32.mrf.mxu0
  %v200 = vadd.f32 %v127, %v199
  %v201 = vpop.f32.mrf.mxu0
  %202 = vdwg.mxu0
  %v203 = vmax.f32 %v200, 0.0
  %v204 = vld [vmem:[%s5] sm:$0xff]
  %v205 = vld [vmem:[%s5 + $0x8] sm:$0xff]
  %v206 = vld [vmem:[%s5 + $0x10] sm:$0xff]
  %v207 = vld [vmem:[%s5 + $0x18] sm:$0xff]
  %v208 = vld [vmem:[%s5 + $0x20] sm:$0xff]
  %v209 = vld [vmem:[%s5 + $0x28] sm:$0xff]
  %v210 = vld [vmem:[%s5 + $0x30] sm:$0xff]
  %v211 = vld [vmem:[%s5 + $0x38] sm:$0xff]
  %v212 = vld [vmem:[%s6] sm:$0x1]
  %v214 = vlaneseq
  %v215 = vshrl.u32 %v214, 7
  %v216 = vsub.s32 0, %v215
  %v217 = vrot.slane %v212, %v216
  %v220 = vsel %vm129, %v203, 0
  %222 = vmatprep.subr.mxu0 0.0
  %223 = vmatpush1.msra.mxu0 0.0
  %224 = vmatprep.subr.mxu0 0.0
  %225 = vmatpush1.msra.mxu0 0.0
  %226 = vmatprep.subr.mxu0 0.0
  %227 = vmatpush1.msra.mxu0 0.0
  %228 = vmatprep.subr.mxu0 0.0
  %229 = vmatpush1.msra.mxu0 0.0
  %230 = vmatprep.subr.mxu0 0.0
  %231 = vmatpush1.msra.mxu0 0.0
  %232 = vmatprep.subr.mxu0 0.0
  %233 = vmatpush1.msra.mxu0 0.0
  %234 = vmatprep.subr.mxu0 0.0
  %235 = vmatpush1.msra.mxu0 0.0
  %236 = vmatprep.subr.mxu0 0.0
  %237 = vmatpush1.msra.mxu0 0.0
  %238 = vmatprep.subr.mxu0 0.0
  %239 = vmatpush1.msra.mxu0 %v211
  %240 = vmatprep.subr.mxu0 0.0
  %241 = vmatpush1.msra.mxu0 %v210
  %242 = vmatprep.subr.mxu0 0.0
  %243 = vmatpush1.msra.mxu0 %v209
  %244 = vmatprep.subr.mxu0 0.0
  %245 = vmatpush1.msra.mxu0 %v208
  %246 = vmatprep.subr.mxu0 0.0
  %247 = vmatpush1.msra.mxu0 %v207
  %248 = vmatprep.subr.mxu0 0.0
  %249 = vmatpush1.msra.mxu0 %v206
  %250 = vmatprep.subr.mxu0 0.0
  %251 = vmatpush1.msra.mxu0 %v205
  %252 = vmatprep.subr.mxu0 0.0
  %253 = vmatpush1.msra.mxu0 %v204
  %254 = vmatprep.subr.mxu0 0.0
  %255 = vmatpush2.msra.mxu0 0.0
  %256 = vmatprep.subr.mxu0 0.0
  %257 = vmatpush2.msra.mxu0 0.0
  %258 = vmatprep.subr.mxu0 0.0
  %259 = vmatpush2.msra.mxu0 0.0
  %260 = vmatprep.subr.mxu0 0.0
  %261 = vmatpush2.msra.mxu0 0.0
  %262 = vmatprep.subr.mxu0 0.0
  %263 = vmatpush2.msra.mxu0 0.0
  %264 = vmatprep.subr.mxu0 0.0
  %265 = vmatpush2.msra.mxu0 0.0
  %266 = vmatprep.subr.mxu0 0.0
  %267 = vmatpush2.msra.mxu0 0.0
  %268 = vmatprep.subr.mxu0 0.0
  %269 = vmatpush2.msra.mxu0 0.0
  %270 = vmatprep.subr.mxu0 0.0
  %271 = vmatpush2.msra.mxu0 0.0
  %272 = vmatprep.subr.mxu0 0.0
  %273 = vmatpush2.msra.mxu0 0.0
  %274 = vmatprep.subr.mxu0 0.0
  %275 = vmatpush2.msra.mxu0 0.0
  %276 = vmatprep.subr.mxu0 0.0
  %277 = vmatpush2.msra.mxu0 0.0
  %278 = vmatprep.subr.mxu0 0.0
  %279 = vmatpush2.msra.mxu0 0.0
  %280 = vmatprep.subr.mxu0 0.0
  %281 = vmatpush2.msra.mxu0 0.0
  %282 = vmatprep.subr.mxu0 0.0
  %283 = vmatpush2.msra.mxu0 0.0
  %284 = vmatprep.subr.mxu0 0.0
  %285 = vmatpush2.msra.mxu0 0.0
  %286 = vmatprep.mubr.f32.mxu0 0.0
  %287 = vmatmul.mubr.f32.gmra.mxu0 %v220
  %v288 = vpop.f32.mrf.mxu0
  %v289 = vadd.f32 %v217, %v288
  %v290 = vpop.f32.mrf.mxu0
  %291 = vdwg.mxu0
  %vm292 = vcmask 64512
  %293 = vst.msk [vmem:[%s7] sm:$0xff] %vm292, %v289
  // Predicated region
  $region30: #{ann_forward.1} parent=0 // pred_check
    _
  $region31: #{ann_forward.1} parent=0 // pred_check_branch
    %295 = sbr.rel (0) target = $region33
  $region32: #{ann_forward.1} parent=0 // pred_region
    _
  $region33: #{ann_forward.1} parent=0 // pred_fallthru
    _
  // Predicated region
  $region34: #{ann_forward.1} parent=0 // pred_check
    _
  $region35: #{ann_forward.1} parent=0 // pred_check_branch
    %297 = sbr.rel (0) target = $region37
  $region36: #{ann_forward.1} parent=0 // pred_region
    _
  $region37: #{ann_forward.1} parent=0 // pred_fallthru
    _

</llo_original>
